<compile_context>
chip_gen: v6e
topology: v6e:2x2x1
jax: 0.10.0
libtpu: 0.0.40
codegen_flags: <defaults>
</compile_context>

<pallas_src>
import functools

import numpy as np

import jax
import jax.numpy as jnp
from jax.experimental import pallas as pl
from jax.experimental.pallas import tpu as pltpu


# ------------------------------- kernel -------------------------------------
def _conv1x1_kernel(x_ref, w_ref, b_ref, o_ref, *, cin, use_mxu):
    # x_ref: (1, Cin, T)   w_ref: (Cout, Cin)   b_ref: (Cout, 1)   o_ref: (1, Cout, T)
    x = x_ref[0]                                            # (Cin, T)
    if use_mxu:
        # Large Cin: one MXU pass, default precision (no HIGHEST multi-pass emulation).
        y = jnp.dot(w_ref[...], x, preferred_element_type=jnp.float32)
    else:
        # Tiny Cin: unrolled VPU broadcast-FMAs, full f32, MXU not needed
        # (kernel is HBM-bound; this also keeps exact f32 accuracy).
        cout = w_ref.shape[0]
        t = x.shape[1]
        y = jnp.zeros((cout, t), jnp.float32)
        for i in range(cin):
            w_col = w_ref[:, i:i + 1].astype(jnp.float32)   # (Cout, 1) -> lane bcast
            x_row = x[i:i + 1, :].astype(jnp.float32)       # (1, T)    -> sublane bcast
            y = y + w_col * x_row
    y = y + b_ref[...].astype(jnp.float32)
    o_ref[0] = y.astype(o_ref.dtype)


# ---------------------------- tile selection ---------------------------------
def _choose_hw_tile(hw, cin, cout, itemsize, vmem_budget_bytes=8 << 20):
    """Largest lane tile (multiple of 128) so that the double-buffered input+output
    blocks stay well under the scoped-VMEM budget (conservative for v7x's 64 MiB)."""
    if hw <= 512:
        return hw                          # full extent: always a legal block dim
    bytes_per_lane = (cin + cout) * itemsize * 2   # x block + out block, 2x buffered
    max_lanes = max(128, vmem_budget_bytes // max(1, bytes_per_lane))
    tile = min(hw, 8192, (max_lanes // 128) * 128)
    return max(128, tile)


# -------------------------------- wrapper ------------------------------------
def outconv(x, w, b):
    """Forward of the PyTorch module: y = Conv2d(in_ch, out_ch, kernel_size=1)(x).

    x: (N, Cin, H, W);  w: (Cout, Cin, 1, 1) or (Cout, Cin);  b: (Cout,)
    Returns (N, Cout, H, W) in x.dtype.
    """
    N, Cin, H, W = x.shape
    w2d = jnp.asarray(w).reshape(-1, Cin).astype(x.dtype)   # (Cout, Cin)
    Cout = w2d.shape[0]
    b2d = jnp.asarray(b).reshape(Cout, 1).astype(x.dtype)
    HW = H * W

    x2 = x.reshape(N, Cin, HW)
    tile = _choose_hw_tile(HW, Cin, Cout, np.dtype(x.dtype).itemsize)
    n_tiles = pl.cdiv(HW, tile)
    use_mxu = Cin > 32                                       # tiny Cin -> VPU FMA path

    out = pl.pallas_call(
        functools.partial(_conv1x1_kernel, cin=Cin, use_mxu=use_mxu),
        out_shape=jax.ShapeDtypeStruct((N, Cout, HW), x.dtype),
        grid=(N, n_tiles),
        in_specs=[
            pl.BlockSpec((1, Cin, tile), lambda n, t: (n, 0, t)),
            pl.BlockSpec((Cout, Cin), lambda n, t: (0, 0)),
            pl.BlockSpec((Cout, 1), lambda n, t: (0, 0)),
        ],
        out_specs=pl.BlockSpec((1, Cout, tile), lambda n, t: (n, 0, t)),
        compiler_params=pltpu.CompilerParams(
            dimension_semantics=("parallel", "parallel"),
            vmem_limit_bytes=32 << 20,
        ),
    )(x2, w2d, b2d)
    return out.reshape(N, Cout, H, W)


# ------------------------------ self-test ------------------------------------
if __name__ == "__main__":
    N, Cin, Cout, H, W = 2, 4, 8, 16, 16

    key = jax.random.PRNGKey(0)
    k1, k2, k3 = jax.random.split(key, 3)
    # Shapes mirror nn.Conv2d(in_ch, out_ch, 1): weight (Cout, Cin, 1, 1), bias (Cout,)
    w = jax.random.normal(k1, (Cout, Cin, 1, 1), jnp.float32) * 0.3
    b = jax.random.normal(k2, (Cout,), jnp.float32) * 0.1
    x = jax.random.normal(k3, (N, Cin, H, W), jnp.float32)

    out = jax.block_until_ready(outconv(x, w, b))

    ref = (np.einsum("oi,nihw->nohw",
                     np.asarray(w)[:, :, 0, 0].astype(np.float64),
                     np.asarray(x).astype(np.float64))
           + np.asarray(b).astype(np.float64)[None, :, None, None])
    np.testing.assert_allclose(np.asarray(out), ref, rtol=1e-5, atol=1e-5)
    print("KERNEL_OK")
</pallas_src>

<mosaic_0001>
module attributes {stable_mosaic.version = 11 : i64} {
  func.func @_conv1x1_kernel(%arg0: i32, %arg1: i32, %arg2: memref<1x4x256xf32, #tpu.memory_space<vmem>>, %arg3: memref<8x4xf32, #tpu.memory_space<vmem>>, %arg4: memref<8x1xf32, #tpu.memory_space<vmem>>, %arg5: memref<1x8x256xf32, #tpu.memory_space<vmem>>) attributes {dimension_semantics = [#tpu.dimension_semantics<parallel>, #tpu.dimension_semantics<parallel>], iteration_bounds = array<i64: 2, 1>, scalar_prefetch = 0 : i64, scratch_operands = 0 : i64, tpu.core_type = #tpu.core_type<tc>, window_params = [{transform_indices = @transform_0, window_bounds = array<i64: 1, 4, 256>}, {pipeline_mode = #tpu.pipeline_mode<synchronous>, transform_indices = @transform_1, window_bounds = array<i64: 8, 4>}, {pipeline_mode = #tpu.pipeline_mode<synchronous>, transform_indices = @transform_2, window_bounds = array<i64: 8, 1>}, {transform_indices = @transform_3, window_bounds = array<i64: 1, 8, 256>}]} {
    %c0 = arith.constant 0 : index
    %c0_0 = arith.constant 0 : index
    %c0_1 = arith.constant 0 : index
    %0 = vector.load %arg2[%c0, %c0_0, %c0_1] : memref<1x4x256xf32, #tpu.memory_space<vmem>>, vector<1x4x256xf32>
    %1 = vector.shape_cast %0 : vector<1x4x256xf32> to vector<4x256xf32>
    %cst = arith.constant 0.000000e+00 : f32
    %2 = vector.broadcast %cst : f32 to vector<8x256xf32>
    %c0_2 = arith.constant 0 : index
    %c0_3 = arith.constant 0 : index
    %3 = vector.load %arg3[%c0_2, %c0_3] : memref<8x4xf32, #tpu.memory_space<vmem>>, vector<8x1xf32>
    %4 = vector.extract_strided_slice %1 {offsets = [0, 0], sizes = [1, 256], strides = [1, 1]} : vector<4x256xf32> to vector<1x256xf32>
    %5 = vector.broadcast %3 : vector<8x1xf32> to vector<8x256xf32>
    %6 = vector.broadcast %4 : vector<1x256xf32> to vector<8x256xf32>
    %7 = arith.mulf %5, %6 : vector<8x256xf32>
    %8 = arith.addf %2, %7 : vector<8x256xf32>
    %c0_4 = arith.constant 0 : index
    %c1 = arith.constant 1 : index
    %9 = vector.load %arg3[%c0_4, %c1] : memref<8x4xf32, #tpu.memory_space<vmem>>, vector<8x1xf32>
    %10 = vector.extract_strided_slice %1 {offsets = [1, 0], sizes = [1, 256], strides = [1, 1]} : vector<4x256xf32> to vector<1x256xf32>
    %11 = vector.broadcast %9 : vector<8x1xf32> to vector<8x256xf32>
    %12 = vector.broadcast %10 : vector<1x256xf32> to vector<8x256xf32>
    %13 = arith.mulf %11, %12 : vector<8x256xf32>
    %14 = arith.addf %8, %13 : vector<8x256xf32>
    %c0_5 = arith.constant 0 : index
    %c2 = arith.constant 2 : index
    %15 = vector.load %arg3[%c0_5, %c2] : memref<8x4xf32, #tpu.memory_space<vmem>>, vector<8x1xf32>
    %16 = vector.extract_strided_slice %1 {offsets = [2, 0], sizes = [1, 256], strides = [1, 1]} : vector<4x256xf32> to vector<1x256xf32>
    %17 = vector.broadcast %15 : vector<8x1xf32> to vector<8x256xf32>
    %18 = vector.broadcast %16 : vector<1x256xf32> to vector<8x256xf32>
    %19 = arith.mulf %17, %18 : vector<8x256xf32>
    %20 = arith.addf %14, %19 : vector<8x256xf32>
    %c0_6 = arith.constant 0 : index
    %c3 = arith.constant 3 : index
    %21 = vector.load %arg3[%c0_6, %c3] : memref<8x4xf32, #tpu.memory_space<vmem>>, vector<8x1xf32>
    %22 = vector.extract_strided_slice %1 {offsets = [3, 0], sizes = [1, 256], strides = [1, 1]} : vector<4x256xf32> to vector<1x256xf32>
    %23 = vector.broadcast %21 : vector<8x1xf32> to vector<8x256xf32>
    %24 = vector.broadcast %22 : vector<1x256xf32> to vector<8x256xf32>
    %25 = arith.mulf %23, %24 : vector<8x256xf32>
    %26 = arith.addf %20, %25 : vector<8x256xf32>
    %c0_7 = arith.constant 0 : index
    %c0_8 = arith.constant 0 : index
    %27 = vector.load %arg4[%c0_7, %c0_8] : memref<8x1xf32, #tpu.memory_space<vmem>>, vector<8x1xf32>
    %28 = vector.broadcast %27 : vector<8x1xf32> to vector<8x256xf32>
    %29 = arith.addf %26, %28 : vector<8x256xf32>
    %c0_9 = arith.constant 0 : index
    %c0_10 = arith.constant 0 : index
    %c0_11 = arith.constant 0 : index
    %30 = vector.load %arg5[%c0_9, %c0_10, %c0_11] : memref<1x8x256xf32, #tpu.memory_space<vmem>>, vector<1x8x256xf32>
    %31 = vector.shape_cast %30 : vector<1x8x256xf32> to vector<8x256xf32>
    %32 = vector.shape_cast %29 : vector<8x256xf32> to vector<1x8x256xf32>
    tpu.vector_store %arg5[%c0_9, %c0_10, %c0_11], %32 {strides = array<i32>} : memref<1x8x256xf32, #tpu.memory_space<vmem>>, vector<1x8x256xf32>,
    return
  }
  func.func @transform_0(%arg0: i32, %arg1: i32) -> (i32, i32, i32) {
    %c0_i32 = arith.constant 0 : i32
    %c0_i32_0 = arith.constant 0 : i32
    return %arg0, %c0_i32, %arg1 : i32, i32, i32
  }
  func.func @transform_1(%arg0: i32, %arg1: i32) -> (i32, i32) {
    %c0_i32 = arith.constant 0 : i32
    %c0_i32_0 = arith.constant 0 : i32
    %c0_i32_1 = arith.constant 0 : i32
    return %c0_i32, %c0_i32_0 : i32, i32
  }
  func.func @transform_2(%arg0: i32, %arg1: i32) -> (i32, i32) {
    %c0_i32 = arith.constant 0 : i32
    %c0_i32_0 = arith.constant 0 : i32
    %c0_i32_1 = arith.constant 0 : i32
    return %c0_i32, %c0_i32_0 : i32, i32
  }
  func.func @transform_3(%arg0: i32, %arg1: i32) -> (i32, i32, i32) {
    %c0_i32 = arith.constant 0 : i32
    %c0_i32_0 = arith.constant 0 : i32
    return %arg0, %c0_i32, %arg1 : i32, i32, i32
  }
}

</mosaic_0001>

<llo_original>
// kernel: tpu_custom_call.1
$region0: #{tpu_custom_call.1}
  #allocation0 [shape = 'u32[]', space=smem, size = 0x4, offset = 0x4, fixed_abs, tag = 'smem constant byte address 0x4 - core index']
  #allocation1 [shape = 'u32[144,128]{1,0:T(1,128)}', space=vmem, size = 0x12000, scoped, tag = 'internal scratch']
  %s0 = inlined_call_operand.vmem [shape: f32[2,4,256], index: 0, kind: input, shape index: {}]
  %s1 = inlined_call_operand.vmem [shape: f32[8,4], index: 1, kind: input, shape index: {}]
  %s2 = inlined_call_operand.vmem [shape: f32[8,1], index: 2, kind: input, shape index: {}]
  %s3 = inlined_call_operand.hbm [shape: f32[2,8,256], index: 3, kind: output, shape index: {}]
  %s4 = sld [smem:[#allocation0]]
  $region45: #{tpu_custom_call.1} parent=0
    _
  %s6 = ssub.s32 1, %s4
  %s7 = scalar_select 0, %s6, %s4
  $region1: #{tpu_custom_call.1} parent=0
    #allocation2 [shape = 'u8[16384]{0}', space=vmem, size = 0x4000, scoped, tag = 'output window, operand 0']
    #allocation3 [shape = 's32[2]{0}', space=sflag, size = 0x8, scoped, tag = 'scoped memory for tpu_custom_call.1']
    %8 = vsyncpa [#allocation3], 0
    %s9 = scalar_lea.sflag [#allocation3], 1
    %10 = vsyncpa %s9, 0
    loop: start=0, step=1, limit=4
    $region2: #{tpu_custom_call.1} parent=1 // loop_pre_header
      _
    $region3: #{tpu_custom_call.1} parent=1 // loop_header
      %s12 = sphi 0, %s16
      %p13 = scmp.ge.s32.totalorder %s12, 4
      %s19 = sphi 0, %s31
      %s20 = sphi 0, %s27
      %s21 = sphi 0, %s19
      %s22 = sphi 0, %s20
      %s23 = sphi 0, %s21
      %s24 = sphi 0, %s22
      %s36 = sphi 0, %s38
      %s39 = sphi 0, %s36
      %s40 = sphi 0, %s39
      %s56 = sphi 0, %s40
      %s60 = sphi 0, %s60
      %s62 = sphi 0, %s60
      %s63 = sphi 0, %s62
      %s77 = sphi 0, %s63
      %s81 = sphi 0, %s81
      %s83 = sphi 0, %s81
      %s84 = sphi 0, %s83
      %s98 = sphi 0, %s84
      %s106 = sphi 0, %s108
      %s109 = sphi 0, %s106
      %s110 = sphi 0, %s109
      %s126 = sphi 0, %s110
    $region4: #{tpu_custom_call.1} parent=1 // loop_header_branch
      %15 = sbr.rel (%p13) target = $region8
    $region5: #{tpu_custom_call.1} parent=1 // loop_body
      %s17 = ssub.s32 %s12, 1
      %s18 = ssub.s32 %s12, 2
      %s25 = sadd.s32 1, %s20
      %p26 = scmp.ge.s32.totalorder %s25, 1
      %s27 = scalar_select %p26, 0, %s25
      %s28 = sadd.s32 1, %s19
      %s29 = scalar_select %p26, %s28, %s19
      %p30 = scmp.ge.s32.totalorder %s29, 2
      %s31 = scalar_select %p30, 0, %s29
      %s32 = ssub.s32 %s19, %s31
      %s33 = ssub.s32 %s20, %s27
      %s34 = sor.u32 %s32, %s33
      %p35 = scmp.eq.s32.totalorder %s34, 0
      %s37 = sadd.s32 %s36, 1
      %s38 = scalar_select %p35, %s36, %s37
      %p41 = pneg %p35
      %p42 = scmp.eq.s32.totalorder %s12, 1
      %p43 = por %p41, %p42
      %p44 = scmp.ne.s32.totalorder %s36, %s39
      %p45 = scmp.eq.s32.totalorder %s12, 0
      %p46 = por %p44, %p45
      %p47 = scmp.ne.s32.totalorder %s36, %s39
      %p48 = scmp.eq.s32.totalorder %s17, 1
      %p49 = por %p47, %p48
      %p50 = scmp.ne.s32.totalorder %s39, %s40
      %p51 = scmp.eq.s32.totalorder %s17, 0
      %p52 = por %p50, %p51
      %p53 = scmp.ne.s32.totalorder %s39, %s40
      %p54 = scmp.eq.s32.totalorder %s18, 1
      %p55 = por %p53, %p54
      %p57 = scmp.ne.s32.totalorder %s40, %s56
      %p58 = scmp.eq.s32.totalorder %s18, 0
      %p59 = por %p57, %p58
      %s61 = sadd.s32 %s60, 1
      %p64 = scmp.eq.s32.totalorder %s12, 1
      %p65 = scmp.ne.s32.totalorder %s60, %s62
      %p66 = scmp.eq.s32.totalorder %s12, 0
      %p67 = por %p65, %p66
      %p68 = scmp.ne.s32.totalorder %s60, %s62
      %p69 = scmp.eq.s32.totalorder %s17, 1
      %p70 = por %p68, %p69
      %p71 = scmp.ne.s32.totalorder %s62, %s63
      %p72 = scmp.eq.s32.totalorder %s17, 0
      %p73 = por %p71, %p72
      %p74 = scmp.ne.s32.totalorder %s62, %s63
      %p75 = scmp.eq.s32.totalorder %s18, 1
      %p76 = por %p74, %p75
      %p78 = scmp.ne.s32.totalorder %s63, %s77
      %p79 = scmp.eq.s32.totalorder %s18, 0
      %p80 = por %p78, %p79
      %s82 = sadd.s32 %s81, 1
      %p85 = scmp.eq.s32.totalorder %s12, 1
      %p86 = scmp.ne.s32.totalorder %s81, %s83
      %p87 = scmp.eq.s32.totalorder %s12, 0
      %p88 = por %p86, %p87
      %p89 = scmp.ne.s32.totalorder %s81, %s83
      %p90 = scmp.eq.s32.totalorder %s17, 1
      %p91 = por %p89, %p90
      %p92 = scmp.ne.s32.totalorder %s83, %s84
      %p93 = scmp.eq.s32.totalorder %s17, 0
      %p94 = por %p92, %p93
      %p95 = scmp.ne.s32.totalorder %s83, %s84
      %p96 = scmp.eq.s32.totalorder %s18, 1
      %p97 = por %p95, %p96
      %p99 = scmp.ne.s32.totalorder %s84, %s98
      %p100 = scmp.eq.s32.totalorder %s18, 0
      %p101 = por %p99, %p100
      %s102 = ssub.s32 %s19, %s31
      %s103 = ssub.s32 %s20, %s27
      %s104 = sor.u32 %s102, %s103
      %p105 = scmp.eq.s32.totalorder %s104, 0
      %s107 = sadd.s32 %s106, 1
      %s108 = scalar_select %p105, %s106, %s107
      %p111 = pneg %p105
      %p112 = scmp.eq.s32.totalorder %s12, 1
      %p113 = por %p111, %p112
      %p114 = scmp.ne.s32.totalorder %s106, %s109
      %p115 = scmp.eq.s32.totalorder %s12, 0
      %p116 = por %p114, %p115
      %p117 = scmp.ne.s32.totalorder %s106, %s109
      %p118 = scmp.eq.s32.totalorder %s17, 1
      %p119 = por %p117, %p118
      %p120 = scmp.ne.s32.totalorder %s109, %s110
      %p121 = scmp.eq.s32.totalorder %s17, 0
      %p122 = por %p120, %p121
      %p123 = scmp.ne.s32.totalorder %s109, %s110
      %p124 = scmp.eq.s32.totalorder %s18, 1
      %p125 = por %p123, %p124
      %p127 = scmp.ne.s32.totalorder %s110, %s126
      %p128 = scmp.eq.s32.totalorder %s18, 0
      %p129 = por %p127, %p128
      %p130 = scmp.le.s32.totalorder 1, %s12
      %p131 = scmp.lt.s32.totalorder %s12, 3
      %p132 = pnand %p130, %p131
      %p133 = pneg %p132
      // Predicated region
      $region9: #{tpu_custom_call.1} parent=5 // pred_check
        _
      $region10: #{tpu_custom_call.1} parent=5 // pred_check_branch
        %135 = sbr.rel (%p132) target = $region12
      $region11: #{tpu_custom_call.1} parent=5 // pred_region
        %s136 = ssub.s32 %s12, 1
        // Predicated region
        $region13: #{tpu_custom_call.1} parent=11 // pred_check
          %p137 = pneg %p73
        $region14: #{tpu_custom_call.1} parent=11 // pred_check_branch
          %139 = sbr.rel (%p137) target = $region16
        $region15: #{tpu_custom_call.1} parent=11 // pred_region
          _
        $region16: #{tpu_custom_call.1} parent=11 // pred_fallthru
          _
        // Predicated region
        $region17: #{tpu_custom_call.1} parent=11 // pred_check
          %p140 = pneg %p94
        $region18: #{tpu_custom_call.1} parent=11 // pred_check_branch
          %142 = sbr.rel (%p140) target = $region20
        $region19: #{tpu_custom_call.1} parent=11 // pred_region
          _
        $region20: #{tpu_custom_call.1} parent=11 // pred_fallthru
          _
      $region12: #{tpu_custom_call.1} parent=5 // pred_fallthru
        _
      %p143 = scmp.lt.s32.totalorder %s12, 2
      // Predicated region
      $region21: #{tpu_custom_call.1} parent=5 // pred_check
        %p144 = pneg %p143
      $region22: #{tpu_custom_call.1} parent=5 // pred_check_branch
        %146 = sbr.rel (%p144) target = $region24
      $region23: #{tpu_custom_call.1} parent=5 // pred_region
        // Predicated region
        $region25: #{tpu_custom_call.1} parent=23 // pred_check
          %p147 = pneg %p46
        $region26: #{tpu_custom_call.1} parent=23 // pred_check_branch
          %149 = sbr.rel (%p147) target = $region28
        $region27: #{tpu_custom_call.1} parent=23 // pred_region
          %s150 = smul.u32 2, %s20
          %p151 = scmp.lt.s32.totalorder %s19, 1
          %s152 = scalar_select %p151, %s19, 1
          %p153 = scmp.lt.s32.totalorder %s150, 1
          %s154 = scalar_select %p153, %s150, 1
          %s155 = smul.addr %s152, 2
          %s156 = sadd.s32 %s154, %s155
          %s157 = smul.addr %s156, 4
          %s158 = scalar_lea.vmem %s0, %s157
          %s159 = smul.u32 2, %s20
        $region28: #{tpu_custom_call.1} parent=23 // pred_fallthru
          _
      $region24: #{tpu_custom_call.1} parent=5 // pred_fallthru
        _
      %p160 = scmp.le.s32.totalorder 1, %s12
      %p161 = scmp.lt.s32.totalorder %s12, 3
      %p162 = pnand %p160, %p161
      %p163 = pneg %p162
      // Predicated region
      $region29: #{tpu_custom_call.1} parent=5 // pred_check
        _
      $region30: #{tpu_custom_call.1} parent=5 // pred_check_branch
        %165 = sbr.rel (%p162) target = $region32
      $region31: #{tpu_custom_call.1} parent=5 // pred_region
        %s166 = ssub.s32 %s12, 1
        %s167 = smul.u32 2, %s22
        %p168 = scmp.lt.s32.totalorder %s21, 1
        %s169 = scalar_select %p168, %s21, 1
        %p170 = scmp.lt.s32.totalorder %s167, 1
        %s171 = scalar_select %p170, %s167, 1
        %s172 = smul.addr %s169, 2
        %s173 = sadd.s32 %s171, %s172
        %s174 = smul.addr %s173, 4
        %s175 = scalar_lea.vmem %s0, %s174
        %p176 = pneg %p52
        %p177 = pneg %p49
        %p178 = pneg %p73
        %p179 = pneg %p70
        %p180 = pneg %p94
        %p181 = pneg %p91
        %p182 = pneg %p122
        %p183 = pneg %p119
        %s184 = sand.u32 %s109, 1
        %s185 = scalar_lea.sflag [#allocation3], %s184
        %s186 = sand.u32 %s109, 1
        %s187 = smul.addr %s186, 16
        %s188 = scalar_lea.vmem [#allocation2], %s187
        %s189 = smul.u32 2, %s22
        %p190 = scmp.lt.s32.totalorder %s21, 1
        %s191 = scalar_select %p190, %s21, 1
        %p192 = scmp.lt.s32.totalorder %s189, 1
        %s193 = scalar_select %p192, %s189, 1
        %s194 = smul.addr %s191, 2
        %s195 = sadd.s32 %s193, %s194
        %s196 = smul.addr %s195, 4
        %s197 = scalar_lea.vmem %s0, %s196
        %s198 = smul.u32 2, %s22
        %s199 = smul.u32 2, %s22
        %v200 = vld [vmem:[%s197] sm:$0xff]
        %v201 = vld [vmem:[%s1] sm:$0xff]
        %203 = vset.pattern.permute.xlu0 0
        %204 = vperm.xlu0 %203, %v201
        %v205 = vpop.permute.xlu0 %204
        %v208 = vlaneseq
        %v209 = vshrl.u32 %v208, 7
        %v210 = vsub.s32 0, %v209
        %v211 = vrot.slane %v200, %v210
        %v212 = vlaneseq
        %v213 = vshrl.u32 %v212, 7
        %v214 = vsub.s32 4, %v213
        %v215 = vrot.slane %v200, %v214
        %v218 = vlaneseq
        %v219 = vshrl.u32 %v218, 7
        %v220 = vsub.s32 0, %v219
        %v221 = vrot.slane %v211, %v220
        %v222 = vlaneseq
        %v223 = vshrl.u32 %v222, 7
        %v224 = vsub.s32 0, %v223
        %v225 = vrot.slane %v215, %v224
        %v226 = vmul.f32 %v205, %v221
        %v227 = vmul.f32 %v205, %v225
        %v228 = vadd.f32 %v226, 0.0
        %v229 = vadd.f32 %v227, 0.0
        %230 = vset.pattern.permute.xlu0 1
        %231 = vperm.xlu0 %230, %v201
        %v232 = vpop.permute.xlu0 %231
        %v234 = vlaneseq
        %v235 = vshrl.u32 %v234, 7
        %v236 = vsub.s32 1, %v235
        %v237 = vrot.slane %v200, %v236
        %v238 = vlaneseq
        %v239 = vshrl.u32 %v238, 7
        %v240 = vsub.s32 5, %v239
        %v241 = vrot.slane %v200, %v240
        %v244 = vlaneseq
        %v245 = vshrl.u32 %v244, 7
        %v246 = vsub.s32 1, %v245
        %v247 = vrot.slane %v237, %v246
        %v248 = vlaneseq
        %v249 = vshrl.u32 %v248, 7
        %v250 = vsub.s32 1, %v249
        %v251 = vrot.slane %v241, %v250
        %v252 = vmul.f32 %v232, %v247
        %v253 = vmul.f32 %v232, %v251
        %v254 = vadd.f32 %v228, %v252
        %v255 = vadd.f32 %v229, %v253
        %256 = vset.pattern.permute.xlu0 2
        %257 = vperm.xlu0 %256, %v201
        %v258 = vpop.permute.xlu0 %257
        %v260 = vlaneseq
        %v261 = vshrl.u32 %v260, 7
        %v262 = vsub.s32 2, %v261
        %v263 = vrot.slane %v200, %v262
        %v264 = vlaneseq
        %v265 = vshrl.u32 %v264, 7
        %v266 = vsub.s32 6, %v265
        %v267 = vrot.slane %v200, %v266
        %v270 = vlaneseq
        %v271 = vshrl.u32 %v270, 7
        %v272 = vsub.s32 2, %v271
        %v273 = vrot.slane %v263, %v272
        %v274 = vlaneseq
        %v275 = vshrl.u32 %v274, 7
        %v276 = vsub.s32 2, %v275
        %v277 = vrot.slane %v267, %v276
        %v278 = vmul.f32 %v258, %v273
        %v279 = vmul.f32 %v258, %v277
        %v280 = vadd.f32 %v254, %v278
        %v281 = vadd.f32 %v255, %v279
        %282 = vset.pattern.permute.xlu0 3
        %283 = vperm.xlu0 %282, %v201
        %v284 = vpop.permute.xlu0 %283
        %v286 = vlaneseq
        %v287 = vshrl.u32 %v286, 7
        %v288 = vsub.s32 3, %v287
        %v289 = vrot.slane %v200, %v288
        %v290 = vlaneseq
        %v291 = vshrl.u32 %v290, 7
        %v292 = vsub.s32 7, %v291
        %v293 = vrot.slane %v200, %v292
        %v296 = vlaneseq
        %v297 = vshrl.u32 %v296, 7
        %v298 = vsub.s32 3, %v297
        %v299 = vrot.slane %v289, %v298
        %v300 = vlaneseq
        %v301 = vshrl.u32 %v300, 7
        %v302 = vsub.s32 3, %v301
        %v303 = vrot.slane %v293, %v302
        %v304 = vmul.f32 %v284, %v299
        %v305 = vmul.f32 %v284, %v303
        %v306 = vadd.f32 %v280, %v304
        %v307 = vadd.f32 %v281, %v305
        %v308 = vld [vmem:[%s2] sm:$0xff]
        %310 = vset.pattern.permute.xlu0 0
        %311 = vperm.xlu0 %310, %v308
        %v312 = vpop.permute.xlu0 %311
        %v314 = vadd.f32 %v306, %v312
        %v315 = vadd.f32 %v307, %v312
        %316 = vst [vmem:[%s188] sm:$0xff] %v314
        %317 = vst [vmem:[%s188 + $0x8] sm:$0xff] %v315
        %s318 = sand.u32 %s109, 1
        %s319 = scalar_lea.sflag [#allocation3], %s318
        %s320 = sand.u32 %s109, 1
        %s321 = smul.addr %s320, 16
        %s322 = scalar_lea.vmem [#allocation2], %s321
        // Predicated region
        $region33: #{tpu_custom_call.1} parent=31 // pred_check
          %p323 = pneg %p119
        $region34: #{tpu_custom_call.1} parent=31 // pred_check_branch
          %325 = sbr.rel (%p323) target = $region36
        $region35: #{tpu_custom_call.1} parent=31 // pred_region
          %s326 = smul.u32 2, %s22
          %s328 = ssub.s32 256, 256
          %329 = vsyncadd %s319, %s328
          %s330 = smul.addr %s21, 2
          %s331 = sadd.s32 %s326, %s330
          %s332 = smul.addr %s331, 128
          %s333 = scalar_lea.hbm %s3, %s332
          %s335 = sshll.u32 %s322, 4
          %s336 = int_to_ptr.vmem [resolvable:$true] %s335
          %338 = dma.vmem_to_hbm [thread:$0]  %s336, 256, %s333, %s319
        $region36: #{tpu_custom_call.1} parent=31 // pred_fallthru
          _
      $region32: #{tpu_custom_call.1} parent=5 // pred_fallthru
        _
      %p339 = scmp.le.s32.totalorder 2, %s12
      // Predicated region
      $region37: #{tpu_custom_call.1} parent=5 // pred_check
        %p340 = pneg %p339
      $region38: #{tpu_custom_call.1} parent=5 // pred_check_branch
        %342 = sbr.rel (%p340) target = $region40
      $region39: #{tpu_custom_call.1} parent=5 // pred_region
        %s343 = ssub.s32 %s12, 2
        // Predicated region
        $region41: #{tpu_custom_call.1} parent=39 // pred_check
          %p344 = pneg %p125
        $region42: #{tpu_custom_call.1} parent=39 // pred_check_branch
          %346 = sbr.rel (%p344) target = $region44
        $region43: #{tpu_custom_call.1} parent=39 // pred_region
          %s347 = sand.u32 %s110, 1
          %s348 = scalar_lea.sflag [#allocation3], %s347
          %s349 = sand.u32 %s110, 1
          %s350 = smul.addr %s349, 16
          %s351 = scalar_lea.vmem [#allocation2], %s350
          %352 = dma.done %s348, 256
        $region44: #{tpu_custom_call.1} parent=39 // pred_fallthru
          _
      $region40: #{tpu_custom_call.1} parent=5 // pred_fallthru
        _
    $region6: #{tpu_custom_call.1} parent=1 // loop_footer
      %s16 = sadd.s32 1, %s12
    $region7: #{tpu_custom_call.1} parent=1 // loop_footer_branch
      %11 = sbr.rel target = $region3
    $region8: #{tpu_custom_call.1} parent=1 // loop_exit
      _
    %353 = vsyncpa [#allocation3], 1
    %s354 = scalar_lea.sflag [#allocation3], 1
    %355 = vsyncpa %s354, 1

</llo_original>
